<compile_context>
chip_gen: v7x
topology: tpu7x:2x2x1
jax: 0.10.0
libtpu: 0.0.40
codegen_flags: <defaults>
</compile_context>

<pallas_src>
import functools

import jax
import jax.numpy as jnp
from jax.experimental import pallas as pl
from jax.experimental.pallas import tpu as pltpu


def _gat_kernel(x_ref, bias_ref, wext_ref, out_ref, *, alpha, nheads, nhid):
    # One fused matmul: columns [h_0 | ... | h_{K-1} | f1_0..f1_{K-1} | f2_0..f2_{K-1}]
    proj = jnp.dot(x_ref[...], wext_ref[...],
                   preferred_element_type=jnp.float32)        # (N, K*H + 2K)
    bias = bias_ref[...]                                      # (N, N): 0 or -9e15
    hk = nheads * nhid

    outs = []
    for k in range(nheads):                                   # unrolled at trace time
        h = proj[:, k * nhid:(k + 1) * nhid]                  # (N, H)
        f1 = proj[:, hk + k:hk + k + 1]                       # (N, 1)
        f2 = proj[:, hk + nheads + k:hk + nheads + k + 1]     # (N, 1)

        # e[i, j] = leakyrelu(a1.h[i] + a2.h[j]); mask via additive bias.
        e = f1 + jnp.transpose(f2)                            # (N, N)
        e = jnp.where(e > 0, e, alpha * e)                    # LeakyReLU(alpha)
        att = e + bias

        # softmax over dim=1 (neighbors); reciprocal on the EUP + one Newton step.
        att = att - jnp.max(att, axis=1, keepdims=True)
        p = jnp.exp(att)
        denom = jnp.sum(p, axis=1, keepdims=True)
        r = pl.reciprocal(denom, approx=True)
        r = r * (2.0 - denom * r)                             # Newton refinement
        att = p * r

        hp = jnp.dot(att, h, preferred_element_type=jnp.float32)  # (N, H)  [MXU]
        # concat=True heads apply ELU (alpha=1.0)
        outs.append(jnp.where(hp > 0, hp, jnp.exp(hp) - 1.0))

    # Single lane-dense write of the concatenated heads (torch.cat dim=1 layout).
    out_ref[...] = jnp.concatenate(outs, axis=1)              # (N, K*H)


def gat_forward(x, adj, W, a1, a2, *, alpha):
    """x: (N, nfeat) f32, adj: (N, N) f32, W: (nheads, nfeat, nhid),
    a1/a2: (nheads, nhid, 1). Returns (N, nheads*nhid) = torch.cat(heads, dim=1)."""
    nheads, nfeat, nhid = W.shape
    N = x.shape[0]

    # Head-concatenated projection weight: columns k*nhid:(k+1)*nhid == W[k].
    W_all = jnp.transpose(W, (1, 0, 2)).reshape(nfeat, nheads * nhid)
    # Fold the attention vectors into the same matmul: column k == W[k] @ a{1,2}[k].
    Wa1 = jnp.matmul(W, a1)[..., 0].T                         # (nfeat, nheads)
    Wa2 = jnp.matmul(W, a2)[..., 0].T                         # (nfeat, nheads)
    Wext = jnp.concatenate([W_all, Wa1, Wa2], axis=1)         # (nfeat, K*H + 2K)

    # Head-invariant additive mask bias (0 where edge, -9e15 where no edge).
    bias = jnp.where(adj > 0, 0.0, -9e15).astype(jnp.float32)

    return pl.pallas_call(
        functools.partial(_gat_kernel, alpha=alpha, nheads=nheads, nhid=nhid),
        out_shape=jax.ShapeDtypeStruct((N, nheads * nhid), jnp.float32),
        in_specs=[
            pl.BlockSpec(memory_space=pltpu.MemorySpace.VMEM),   # x
            pl.BlockSpec(memory_space=pltpu.MemorySpace.VMEM),   # bias
            pl.BlockSpec(memory_space=pltpu.MemorySpace.VMEM),   # Wext
        ],
        out_specs=pl.BlockSpec(memory_space=pltpu.MemorySpace.VMEM),
    )(x, bias, Wext)


def _gat_reference(x, adj, W, a1, a2, *, alpha):
    """Pure-JAX reference mirroring the PyTorch forward (dropout p=0)."""
    outs = []
    for k in range(W.shape[0]):
        h = x @ W[k]
        e = h @ a1[k] + (h @ a2[k]).T
        e = jnp.where(e > 0, e, alpha * e)
        att = jnp.where(adj > 0, e, -9e15)
        att = jax.nn.softmax(att, axis=1)
        hp = att @ h
        outs.append(jnp.where(hp > 0, hp, jnp.exp(hp) - 1.0))
    return jnp.concatenate(outs, axis=1)


if __name__ == "__main__":
    # Small deterministic problem: N=8 nodes, nfeat=32, nhid=16, nheads=4.
    N, NFEAT, NHID, NHEADS = 8, 32, 16, 4
    ALPHA = 0.2       # LeakyReLU negative slope
    DROPOUT = 0.0     # identity dropout (see header comment)

    key = jax.random.PRNGKey(0)
    kx, kadj, kw, ka = jax.random.split(key, 4)

    x = jax.random.normal(kx, (N, NFEAT), dtype=jnp.float32)

    # Random sparse-ish symmetric adjacency with self loops.
    adj_rand = jax.random.uniform(kadj, (N, N))
    adj = ((adj_rand + adj_rand.T) > 1.0).astype(jnp.float32)
    adj = jnp.maximum(adj, jnp.eye(N, dtype=jnp.float32))

    # Deterministic "xavier-like" parameter init (stacked per head).
    W = 0.1 * jax.random.normal(kw, (NHEADS, NFEAT, NHID), dtype=jnp.float32)
    a = 0.1 * jax.random.normal(ka, (NHEADS, 2 * NHID, 1), dtype=jnp.float32)
    a1, a2 = a[:, :NHID, :], a[:, NHID:, :]

    out = jax.block_until_ready(gat_forward(x, adj, W, a1, a2, alpha=ALPHA))
    ref = _gat_reference(x, adj, W, a1, a2, alpha=ALPHA)

    assert out.shape == (N, NHEADS * NHID), out.shape
    assert jnp.allclose(out, ref, atol=1e-4, rtol=1e-4), "mismatch vs reference"
    print("KERNEL_OK")
</pallas_src>

<mosaic_0001>
module attributes {stable_mosaic.version = 11 : i64} {
  func.func @_gat_kernel(%arg0: memref<8x32xf32, #tpu.memory_space<vmem>>, %arg1: memref<8x8xf32, #tpu.memory_space<vmem>>, %arg2: memref<32x72xf32, #tpu.memory_space<vmem>>, %arg3: memref<8x64xf32, #tpu.memory_space<vmem>>) attributes {dimension_semantics = [], scalar_prefetch = 0 : i64, scratch_operands = 0 : i64, tpu.core_type = #tpu.core_type<tc>} {
    %c0 = arith.constant 0 : index
    %c0_0 = arith.constant 0 : index
    %0 = vector.load %arg0[%c0, %c0_0] : memref<8x32xf32, #tpu.memory_space<vmem>>, vector<8x32xf32>
    %c0_1 = arith.constant 0 : index
    %c0_2 = arith.constant 0 : index
    %1 = vector.load %arg2[%c0_1, %c0_2] : memref<32x72xf32, #tpu.memory_space<vmem>>, vector<32x72xf32>
    %cst = arith.constant dense<0.000000e+00> : vector<8x72xf32>
    %2 = tpu.matmul %0, %1, %cst {dimension_numbers = #tpu.dot_dimension_numbers<[1], [0], [0], [1], [0, 0, 1, 1], [], []>} : vector<8x32xf32>, vector<32x72xf32>, vector<8x72xf32> -> vector<8x72xf32>
    %c0_3 = arith.constant 0 : index
    %c0_4 = arith.constant 0 : index
    %3 = vector.load %arg1[%c0_3, %c0_4] : memref<8x8xf32, #tpu.memory_space<vmem>>, vector<8x8xf32>
    %4 = vector.extract_strided_slice %2 {offsets = [0, 0], sizes = [8, 16], strides = [1, 1]} : vector<8x72xf32> to vector<8x16xf32>
    %5 = vector.extract_strided_slice %2 {offsets = [0, 64], sizes = [8, 1], strides = [1, 1]} : vector<8x72xf32> to vector<8x1xf32>
    %6 = vector.extract_strided_slice %2 {offsets = [0, 68], sizes = [8, 1], strides = [1, 1]} : vector<8x72xf32> to vector<8x1xf32>
    %7 = tpu.transpose %6, [1, 0] : vector<8x1xf32> -> vector<1x8xf32>
    %8 = vector.broadcast %5 : vector<8x1xf32> to vector<8x8xf32>
    %9 = vector.broadcast %7 : vector<1x8xf32> to vector<8x8xf32>
    %10 = arith.addf %8, %9 : vector<8x8xf32>
    %cst_5 = arith.constant 0.000000e+00 : f32
    %11 = vector.broadcast %cst_5 : f32 to vector<8x8xf32>
    %12 = arith.cmpf ogt, %10, %11 : vector<8x8xf32>
    %cst_6 = arith.constant 2.000000e-01 : f32
    %13 = vector.broadcast %cst_6 : f32 to vector<8x8xf32>
    %14 = arith.mulf %13, %10 : vector<8x8xf32>
    %15 = arith.select %12, %10, %14 : vector<8x8xi1>, vector<8x8xf32>
    %16 = arith.addf %15, %3 : vector<8x8xf32>
    %cst_7 = arith.constant dense<0xFF800000> : vector<8xf32>
    %17 = vector.multi_reduction <maximumf>, %16, %cst_7 [1] : vector<8x8xf32> to vector<8xf32>
    %18 = vector.shape_cast %17 : vector<8xf32> to vector<8x1xf32>
    %19 = vector.broadcast %18 : vector<8x1xf32> to vector<8x8xf32>
    %20 = arith.subf %16, %19 : vector<8x8xf32>
    %21 = math.exp %20 : vector<8x8xf32>
    %cst_8 = arith.constant dense<0.000000e+00> : vector<8xf32>
    %22 = vector.multi_reduction <add>, %21, %cst_8 [1] : vector<8x8xf32> to vector<8xf32>
    %23 = vector.shape_cast %22 : vector<8xf32> to vector<8x1xf32>
    %24 = tpu.reciprocal %23 {approx = true} : vector<8x1xf32> -> vector<8x1xf32>
    %25 = arith.mulf %23, %24 : vector<8x1xf32>
    %cst_9 = arith.constant 2.000000e+00 : f32
    %26 = vector.broadcast %cst_9 : f32 to vector<8x1xf32>
    %27 = arith.subf %26, %25 : vector<8x1xf32>
    %28 = arith.mulf %24, %27 : vector<8x1xf32>
    %29 = vector.broadcast %28 : vector<8x1xf32> to vector<8x8xf32>
    %30 = arith.mulf %21, %29 : vector<8x8xf32>
    %cst_10 = arith.constant dense<0.000000e+00> : vector<8x16xf32>
    %31 = tpu.matmul %30, %4, %cst_10 {dimension_numbers = #tpu.dot_dimension_numbers<[1], [0], [0], [1], [0, 0, 1, 1], [], []>} : vector<8x8xf32>, vector<8x16xf32>, vector<8x16xf32> -> vector<8x16xf32>
    %cst_11 = arith.constant 0.000000e+00 : f32
    %32 = vector.broadcast %cst_11 : f32 to vector<8x16xf32>
    %33 = arith.cmpf ogt, %31, %32 : vector<8x16xf32>
    %34 = math.exp %31 : vector<8x16xf32>
    %cst_12 = arith.constant 1.000000e+00 : f32
    %35 = vector.broadcast %cst_12 : f32 to vector<8x16xf32>
    %36 = arith.subf %34, %35 : vector<8x16xf32>
    %37 = arith.select %33, %31, %36 : vector<8x16xi1>, vector<8x16xf32>
    %38 = vector.extract_strided_slice %2 {offsets = [0, 16], sizes = [8, 16], strides = [1, 1]} : vector<8x72xf32> to vector<8x16xf32>
    %39 = vector.extract_strided_slice %2 {offsets = [0, 65], sizes = [8, 1], strides = [1, 1]} : vector<8x72xf32> to vector<8x1xf32>
    %40 = vector.extract_strided_slice %2 {offsets = [0, 69], sizes = [8, 1], strides = [1, 1]} : vector<8x72xf32> to vector<8x1xf32>
    %41 = tpu.transpose %40, [1, 0] : vector<8x1xf32> -> vector<1x8xf32>
    %42 = vector.broadcast %39 : vector<8x1xf32> to vector<8x8xf32>
    %43 = vector.broadcast %41 : vector<1x8xf32> to vector<8x8xf32>
    %44 = arith.addf %42, %43 : vector<8x8xf32>
    %cst_13 = arith.constant 0.000000e+00 : f32
    %45 = vector.broadcast %cst_13 : f32 to vector<8x8xf32>
    %46 = arith.cmpf ogt, %44, %45 : vector<8x8xf32>
    %cst_14 = arith.constant 2.000000e-01 : f32
    %47 = vector.broadcast %cst_14 : f32 to vector<8x8xf32>
    %48 = arith.mulf %47, %44 : vector<8x8xf32>
    %49 = arith.select %46, %44, %48 : vector<8x8xi1>, vector<8x8xf32>
    %50 = arith.addf %49, %3 : vector<8x8xf32>
    %cst_15 = arith.constant dense<0xFF800000> : vector<8xf32>
    %51 = vector.multi_reduction <maximumf>, %50, %cst_15 [1] : vector<8x8xf32> to vector<8xf32>
    %52 = vector.shape_cast %51 : vector<8xf32> to vector<8x1xf32>
    %53 = vector.broadcast %52 : vector<8x1xf32> to vector<8x8xf32>
    %54 = arith.subf %50, %53 : vector<8x8xf32>
    %55 = math.exp %54 : vector<8x8xf32>
    %cst_16 = arith.constant dense<0.000000e+00> : vector<8xf32>
    %56 = vector.multi_reduction <add>, %55, %cst_16 [1] : vector<8x8xf32> to vector<8xf32>
    %57 = vector.shape_cast %56 : vector<8xf32> to vector<8x1xf32>
    %58 = tpu.reciprocal %57 {approx = true} : vector<8x1xf32> -> vector<8x1xf32>
    %59 = arith.mulf %57, %58 : vector<8x1xf32>
    %cst_17 = arith.constant 2.000000e+00 : f32
    %60 = vector.broadcast %cst_17 : f32 to vector<8x1xf32>
    %61 = arith.subf %60, %59 : vector<8x1xf32>
    %62 = arith.mulf %58, %61 : vector<8x1xf32>
    %63 = vector.broadcast %62 : vector<8x1xf32> to vector<8x8xf32>
    %64 = arith.mulf %55, %63 : vector<8x8xf32>
    %cst_18 = arith.constant dense<0.000000e+00> : vector<8x16xf32>
    %65 = tpu.matmul %64, %38, %cst_18 {dimension_numbers = #tpu.dot_dimension_numbers<[1], [0], [0], [1], [0, 0, 1, 1], [], []>} : vector<8x8xf32>, vector<8x16xf32>, vector<8x16xf32> -> vector<8x16xf32>
    %cst_19 = arith.constant 0.000000e+00 : f32
    %66 = vector.broadcast %cst_19 : f32 to vector<8x16xf32>
    %67 = arith.cmpf ogt, %65, %66 : vector<8x16xf32>
    %68 = math.exp %65 : vector<8x16xf32>
    %cst_20 = arith.constant 1.000000e+00 : f32
    %69 = vector.broadcast %cst_20 : f32 to vector<8x16xf32>
    %70 = arith.subf %68, %69 : vector<8x16xf32>
    %71 = arith.select %67, %65, %70 : vector<8x16xi1>, vector<8x16xf32>
    %72 = vector.extract_strided_slice %2 {offsets = [0, 32], sizes = [8, 16], strides = [1, 1]} : vector<8x72xf32> to vector<8x16xf32>
    %73 = vector.extract_strided_slice %2 {offsets = [0, 66], sizes = [8, 1], strides = [1, 1]} : vector<8x72xf32> to vector<8x1xf32>
    %74 = vector.extract_strided_slice %2 {offsets = [0, 70], sizes = [8, 1], strides = [1, 1]} : vector<8x72xf32> to vector<8x1xf32>
    %75 = tpu.transpose %74, [1, 0] : vector<8x1xf32> -> vector<1x8xf32>
    %76 = vector.broadcast %73 : vector<8x1xf32> to vector<8x8xf32>
    %77 = vector.broadcast %75 : vector<1x8xf32> to vector<8x8xf32>
    %78 = arith.addf %76, %77 : vector<8x8xf32>
    %cst_21 = arith.constant 0.000000e+00 : f32
    %79 = vector.broadcast %cst_21 : f32 to vector<8x8xf32>
    %80 = arith.cmpf ogt, %78, %79 : vector<8x8xf32>
    %cst_22 = arith.constant 2.000000e-01 : f32
    %81 = vector.broadcast %cst_22 : f32 to vector<8x8xf32>
    %82 = arith.mulf %81, %78 : vector<8x8xf32>
    %83 = arith.select %80, %78, %82 : vector<8x8xi1>, vector<8x8xf32>
    %84 = arith.addf %83, %3 : vector<8x8xf32>
    %cst_23 = arith.constant dense<0xFF800000> : vector<8xf32>
    %85 = vector.multi_reduction <maximumf>, %84, %cst_23 [1] : vector<8x8xf32> to vector<8xf32>
    %86 = vector.shape_cast %85 : vector<8xf32> to vector<8x1xf32>
    %87 = vector.broadcast %86 : vector<8x1xf32> to vector<8x8xf32>
    %88 = arith.subf %84, %87 : vector<8x8xf32>
    %89 = math.exp %88 : vector<8x8xf32>
    %cst_24 = arith.constant dense<0.000000e+00> : vector<8xf32>
    %90 = vector.multi_reduction <add>, %89, %cst_24 [1] : vector<8x8xf32> to vector<8xf32>
    %91 = vector.shape_cast %90 : vector<8xf32> to vector<8x1xf32>
    %92 = tpu.reciprocal %91 {approx = true} : vector<8x1xf32> -> vector<8x1xf32>
    %93 = arith.mulf %91, %92 : vector<8x1xf32>
    %cst_25 = arith.constant 2.000000e+00 : f32
    %94 = vector.broadcast %cst_25 : f32 to vector<8x1xf32>
    %95 = arith.subf %94, %93 : vector<8x1xf32>
    %96 = arith.mulf %92, %95 : vector<8x1xf32>
    %97 = vector.broadcast %96 : vector<8x1xf32> to vector<8x8xf32>
    %98 = arith.mulf %89, %97 : vector<8x8xf32>
    %cst_26 = arith.constant dense<0.000000e+00> : vector<8x16xf32>
    %99 = tpu.matmul %98, %72, %cst_26 {dimension_numbers = #tpu.dot_dimension_numbers<[1], [0], [0], [1], [0, 0, 1, 1], [], []>} : vector<8x8xf32>, vector<8x16xf32>, vector<8x16xf32> -> vector<8x16xf32>
    %cst_27 = arith.constant 0.000000e+00 : f32
    %100 = vector.broadcast %cst_27 : f32 to vector<8x16xf32>
    %101 = arith.cmpf ogt, %99, %100 : vector<8x16xf32>
    %102 = math.exp %99 : vector<8x16xf32>
    %cst_28 = arith.constant 1.000000e+00 : f32
    %103 = vector.broadcast %cst_28 : f32 to vector<8x16xf32>
    %104 = arith.subf %102, %103 : vector<8x16xf32>
    %105 = arith.select %101, %99, %104 : vector<8x16xi1>, vector<8x16xf32>
    %106 = vector.extract_strided_slice %2 {offsets = [0, 48], sizes = [8, 16], strides = [1, 1]} : vector<8x72xf32> to vector<8x16xf32>
    %107 = vector.extract_strided_slice %2 {offsets = [0, 67], sizes = [8, 1], strides = [1, 1]} : vector<8x72xf32> to vector<8x1xf32>
    %108 = vector.extract_strided_slice %2 {offsets = [0, 71], sizes = [8, 1], strides = [1, 1]} : vector<8x72xf32> to vector<8x1xf32>
    %109 = tpu.transpose %108, [1, 0] : vector<8x1xf32> -> vector<1x8xf32>
    %110 = vector.broadcast %107 : vector<8x1xf32> to vector<8x8xf32>
    %111 = vector.broadcast %109 : vector<1x8xf32> to vector<8x8xf32>
    %112 = arith.addf %110, %111 : vector<8x8xf32>
    %cst_29 = arith.constant 0.000000e+00 : f32
    %113 = vector.broadcast %cst_29 : f32 to vector<8x8xf32>
    %114 = arith.cmpf ogt, %112, %113 : vector<8x8xf32>
    %cst_30 = arith.constant 2.000000e-01 : f32
    %115 = vector.broadcast %cst_30 : f32 to vector<8x8xf32>
    %116 = arith.mulf %115, %112 : vector<8x8xf32>
    %117 = arith.select %114, %112, %116 : vector<8x8xi1>, vector<8x8xf32>
    %118 = arith.addf %117, %3 : vector<8x8xf32>
    %cst_31 = arith.constant dense<0xFF800000> : vector<8xf32>
    %119 = vector.multi_reduction <maximumf>, %118, %cst_31 [1] : vector<8x8xf32> to vector<8xf32>
    %120 = vector.shape_cast %119 : vector<8xf32> to vector<8x1xf32>
    %121 = vector.broadcast %120 : vector<8x1xf32> to vector<8x8xf32>
    %122 = arith.subf %118, %121 : vector<8x8xf32>
    %123 = math.exp %122 : vector<8x8xf32>
    %cst_32 = arith.constant dense<0.000000e+00> : vector<8xf32>
    %124 = vector.multi_reduction <add>, %123, %cst_32 [1] : vector<8x8xf32> to vector<8xf32>
    %125 = vector.shape_cast %124 : vector<8xf32> to vector<8x1xf32>
    %126 = tpu.reciprocal %125 {approx = true} : vector<8x1xf32> -> vector<8x1xf32>
    %127 = arith.mulf %125, %126 : vector<8x1xf32>
    %cst_33 = arith.constant 2.000000e+00 : f32
    %128 = vector.broadcast %cst_33 : f32 to vector<8x1xf32>
    %129 = arith.subf %128, %127 : vector<8x1xf32>
    %130 = arith.mulf %126, %129 : vector<8x1xf32>
    %131 = vector.broadcast %130 : vector<8x1xf32> to vector<8x8xf32>
    %132 = arith.mulf %123, %131 : vector<8x8xf32>
    %cst_34 = arith.constant dense<0.000000e+00> : vector<8x16xf32>
    %133 = tpu.matmul %132, %106, %cst_34 {dimension_numbers = #tpu.dot_dimension_numbers<[1], [0], [0], [1], [0, 0, 1, 1], [], []>} : vector<8x8xf32>, vector<8x16xf32>, vector<8x16xf32> -> vector<8x16xf32>
    %cst_35 = arith.constant 0.000000e+00 : f32
    %134 = vector.broadcast %cst_35 : f32 to vector<8x16xf32>
    %135 = arith.cmpf ogt, %133, %134 : vector<8x16xf32>
    %136 = math.exp %133 : vector<8x16xf32>
    %cst_36 = arith.constant 1.000000e+00 : f32
    %137 = vector.broadcast %cst_36 : f32 to vector<8x16xf32>
    %138 = arith.subf %136, %137 : vector<8x16xf32>
    %139 = arith.select %135, %133, %138 : vector<8x16xi1>, vector<8x16xf32>
    %140 = tpu.concatenate %37, %71, %105, %139 in 1 : vector<8x16xf32>, vector<8x16xf32>, vector<8x16xf32>, vector<8x16xf32> -> vector<8x64xf32>
    %c0_37 = arith.constant 0 : index
    %c0_38 = arith.constant 0 : index
    %141 = vector.load %arg3[%c0_37, %c0_38] : memref<8x64xf32, #tpu.memory_space<vmem>>, vector<8x64xf32>
    tpu.vector_store %arg3[%c0_37, %c0_38], %140 {strides = array<i32>} : memref<8x64xf32, #tpu.memory_space<vmem>>, vector<8x64xf32>,
    return
  }
}

</mosaic_0001>

<llo_original>
// kernel: tpu_custom_call.1
$region0: #{tpu_custom_call.1}
  #allocation0 [shape = 'u32[]', space=smem, size = 0x4, offset = 0x4, fixed_abs, tag = 'smem constant byte address 0x4 - core index']
  #allocation1 [shape = 'u32[144,128]{1,0:T(1,128)}', space=vmem, size = 0x12000, scoped, tag = 'internal scratch']
  %s0 = inlined_call_operand.hbm [shape: f32[8,32], index: 0, kind: input, shape index: {}]
  %s1 = inlined_call_operand.hbm [shape: f32[8,8], index: 1, kind: input, shape index: {}]
  %s2 = inlined_call_operand.hbm [shape: f32[32,72], index: 2, kind: input, shape index: {}]
  %s3 = inlined_call_operand.hbm [shape: f32[8,64], index: 3, kind: output, shape index: {}]
  %s4 = sld [smem:[#allocation0]]
  $region34: #{tpu_custom_call.1} parent=0
    _
  %s6 = ssub.s32 1, %s4
  %s7 = scalar_select 0, %s6, %s4
  $region1: #{tpu_custom_call.1} parent=0
    #allocation2 [shape = 'u8[4096]{0}', space=vmem, size = 0x1000, scoped, tag = 'input window, operand 0, single buffered']
    #allocation3 [shape = 's32[1]{0}', space=sflag, size = 0x4, scoped, tag = 'scoped memory for tpu_custom_call.1']
    #allocation4 [shape = 's32[1]{0}', space=sflag, size = 0x4, scoped, tag = 'scoped memory for tpu_custom_call.1']
    #allocation5 [shape = 'u8[4096]{0}', space=vmem, size = 0x1000, scoped, tag = 'input window, operand 1, single buffered']
    #allocation6 [shape = 's32[1]{0}', space=sflag, size = 0x4, scoped, tag = 'scoped memory for tpu_custom_call.1']
    #allocation7 [shape = 'u8[16384]{0}', space=vmem, size = 0x4000, scoped, tag = 'input window, operand 2, single buffered']
    #allocation8 [shape = 'u8[4096]{0}', space=vmem, size = 0x1000, scoped, tag = 'output window, operand 0, single buffered']
    %8 = vsyncpa [#allocation3], 0
    %9 = vsyncpa [#allocation6], 0
    %10 = vsyncpa [#allocation4], 0
    // Predicated region
    $region2: #{tpu_custom_call.1} parent=1 // pred_check
      _
    $region3: #{tpu_custom_call.1} parent=1 // pred_check_branch
      %12 = sbr.rel (0) target = $region5
    $region4: #{tpu_custom_call.1} parent=1 // pred_region
      %s14 = ssub.s32 128, 128
      %15 = vsyncadd [#allocation3], %s14
      %s17 = sshll.u32 [#allocation2], 4
      %s18 = int_to_ptr.vmem [resolvable:$true] %s17
      %20 = dma.hbm_to_vmem [thread:$0]  %s0, 128, %s18, [#allocation3]
    $region5: #{tpu_custom_call.1} parent=1 // pred_fallthru
      _
    // Predicated region
    $region6: #{tpu_custom_call.1} parent=1 // pred_check
      _
    $region7: #{tpu_custom_call.1} parent=1 // pred_check_branch
      %22 = sbr.rel (0) target = $region9
    $region8: #{tpu_custom_call.1} parent=1 // pred_region
      %s24 = ssub.s32 128, 128
      %25 = vsyncadd [#allocation6], %s24
      %s27 = sshll.u32 [#allocation5], 4
      %s28 = int_to_ptr.vmem [resolvable:$true] %s27
      %30 = dma.hbm_to_vmem [thread:$0]  %s1, 128, %s28, [#allocation6]
    $region9: #{tpu_custom_call.1} parent=1 // pred_fallthru
      _
    // Predicated region
    $region10: #{tpu_custom_call.1} parent=1 // pred_check
      _
    $region11: #{tpu_custom_call.1} parent=1 // pred_check_branch
      %32 = sbr.rel (0) target = $region13
    $region12: #{tpu_custom_call.1} parent=1 // pred_region
      %s34 = ssub.s32 512, 512
      %35 = vsyncadd [#allocation6], %s34
      %s36 = sshll.u32 [#allocation7], 4
      %s37 = int_to_ptr.vmem [resolvable:$true] %s36
      %42 = dma.hbm_to_vmem [thread:$0]  %s2, 512, %s37, [#allocation6], 128, 128, 8
    $region13: #{tpu_custom_call.1} parent=1 // pred_fallthru
      _
    // Predicated region
    $region14: #{tpu_custom_call.1} parent=1 // pred_check
      _
    $region15: #{tpu_custom_call.1} parent=1 // pred_check_branch
      %44 = sbr.rel (0) target = $region17
    $region16: #{tpu_custom_call.1} parent=1 // pred_region
      %45 = dma.done [#allocation3], 128
    $region17: #{tpu_custom_call.1} parent=1 // pred_fallthru
      _
    // Predicated region
    $region18: #{tpu_custom_call.1} parent=1 // pred_check
      _
    $region19: #{tpu_custom_call.1} parent=1 // pred_check_branch
      %47 = sbr.rel (0) target = $region21
    $region20: #{tpu_custom_call.1} parent=1 // pred_region
      %48 = dma.done [#allocation6], 128
    $region21: #{tpu_custom_call.1} parent=1 // pred_fallthru
      _
    // Predicated region
    $region22: #{tpu_custom_call.1} parent=1 // pred_check
      _
    $region23: #{tpu_custom_call.1} parent=1 // pred_check_branch
      %50 = sbr.rel (0) target = $region25
    $region24: #{tpu_custom_call.1} parent=1 // pred_region
      %51 = dma.done [#allocation6], 512
    $region25: #{tpu_custom_call.1} parent=1 // pred_fallthru
      _
    %v52 = vld [vmem:[#allocation2] sm:$0xff]
    %v53 = vld [vmem:[#allocation7] sm:$0xff]
    %v54 = vld [vmem:[#allocation7 + $0x8] sm:$0xff]
    %v55 = vld [vmem:[#allocation7 + $0x10] sm:$0xff]
    %v56 = vld [vmem:[#allocation7 + $0x18] sm:$0xff]
    %vm57 = vcmask 261120
    %v59 = vsel %vm57, %v52, 0
    %61 = vmatprep.subr.mxu0 0.0
    %62 = vmatpush1.msra.mxu0 %v53
    %63 = vmatprep.subr.mxu0 0.0
    %64 = vmatpush1.msra.mxu0 %v54
    %65 = vmatprep.subr.mxu0 0.0
    %66 = vmatpush1.msra.mxu0 %v55
    %67 = vmatprep.subr.mxu0 0.0
    %68 = vmatpush1.msra.mxu0 %v56
    %69 = vmatprep.subr.mxu0 0.0
    %70 = vmatpush1.msra.mxu0 0.0
    %71 = vmatprep.subr.mxu0 0.0
    %72 = vmatpush1.msra.mxu0 0.0
    %73 = vmatprep.subr.mxu0 0.0
    %74 = vmatpush1.msra.mxu0 0.0
    %75 = vmatprep.subr.mxu0 0.0
    %76 = vmatpush1.msra.mxu0 0.0
    %77 = vmatprep.subr.mxu0 0.0
    %78 = vmatpush1.msra.mxu0 0.0
    %79 = vmatprep.subr.mxu0 0.0
    %80 = vmatpush1.msra.mxu0 0.0
    %81 = vmatprep.subr.mxu0 0.0
    %82 = vmatpush1.msra.mxu0 0.0
    %83 = vmatprep.subr.mxu0 0.0
    %84 = vmatpush1.msra.mxu0 0.0
    %85 = vmatprep.subr.mxu0 0.0
    %86 = vmatpush1.msra.mxu0 0.0
    %87 = vmatprep.subr.mxu0 0.0
    %88 = vmatpush1.msra.mxu0 0.0
    %89 = vmatprep.subr.mxu0 0.0
    %90 = vmatpush1.msra.mxu0 0.0
    %91 = vmatprep.subr.mxu0 0.0
    %92 = vmatpush1.msra.mxu0 0.0
    %93 = vmatprep.subr.mxu0 0.0
    %94 = vmatpush1.msra.mxu0 0.0
    %95 = vmatprep.subr.mxu0 0.0
    %96 = vmatpush1.msra.mxu0 0.0
    %97 = vmatprep.subr.mxu0 0.0
    %98 = vmatpush1.msra.mxu0 0.0
    %99 = vmatprep.subr.mxu0 0.0
    %100 = vmatpush1.msra.mxu0 0.0
    %101 = vmatprep.subr.mxu0 0.0
    %102 = vmatpush1.msra.mxu0 0.0
    %103 = vmatprep.subr.mxu0 0.0
    %104 = vmatpush1.msra.mxu0 0.0
    %105 = vmatprep.subr.mxu0 0.0
    %106 = vmatpush1.msra.mxu0 0.0
    %107 = vmatprep.subr.mxu0 0.0
    %108 = vmatpush1.msra.mxu0 0.0
    %109 = vmatprep.subr.mxu0 0.0
    %110 = vmatpush1.msra.mxu0 0.0
    %111 = vmatprep.subr.mxu0 0.0
    %112 = vmatpush1.msra.mxu0 0.0
    %113 = vmatprep.subr.mxu0 0.0
    %114 = vmatpush1.msra.mxu0 0.0
    %115 = vmatprep.subr.mxu0 0.0
    %116 = vmatpush1.msra.mxu0 0.0
    %117 = vmatprep.subr.mxu0 0.0
    %118 = vmatpush1.msra.mxu0 0.0
    %119 = vmatprep.subr.mxu0 0.0
    %120 = vmatpush1.msra.mxu0 0.0
    %121 = vmatprep.subr.mxu0 0.0
    %122 = vmatpush1.msra.mxu0 0.0
    %123 = vmatprep.subr.mxu0 0.0
    %124 = vmatpush1.msra.mxu0 0.0
    %125 = vmatprep.mubr.f32.mxu0 0.0
    %126 = vmatmul.mubr.f32.gmra.mrb[0].mxu0 %v59
    %v127 = vpop.f32.mrb[0].mxu0
    %v128 = vadd.f32 0.0, %v127
    %v129 = vpop.f32.mrb[0].mxu0
    %130 = vdwg.mxu0
    %v131 = vld [vmem:[#allocation5] sm:$0xff]
    %133 = vrot.lane.b32.xlu0 %v128, 60
    %v134 = vpop.permute.xlu0 %133
    %136 = vxpose.xlu0.b32.start [1/16] %v134, 128
    %137 = vxpose.xlu0.b32.cont [2/16] 0.0, 128
    %138 = vxpose.xlu0.b32.cont [3/16] 0.0, 128
    %139 = vxpose.xlu0.b32.cont [4/16] 0.0, 128
    %140 = vxpose.xlu0.b32.cont [5/16] 0.0, 128
    %141 = vxpose.xlu0.b32.cont [6/16] 0.0, 128
    %142 = vxpose.xlu0.b32.cont [7/16] 0.0, 128
    %143 = vxpose.xlu0.b32.cont [8/16] 0.0, 128
    %144 = vxpose.xlu0.b32.cont [9/16] 0.0, 128
    %145 = vxpose.xlu0.b32.cont [10/16] 0.0, 128
    %146 = vxpose.xlu0.b32.cont [11/16] 0.0, 128
    %147 = vxpose.xlu0.b32.cont [12/16] 0.0, 128
    %148 = vxpose.xlu0.b32.cont [13/16] 0.0, 128
    %149 = vxpose.xlu0.b32.cont [14/16] 0.0, 128
    %150 = vxpose.xlu0.b32.cont [15/16] 0.0, 128
    %151 = vxpose.xlu0.b32.end [16/16] 0.0, 128
    %v152 = vpop.trf.xlu0
    %v153 = vpop.trf.xlu0
    %v154 = vpop.trf.xlu0
    %v155 = vpop.trf.xlu0
    %v156 = vpop.trf.xlu0
    %v157 = vpop.trf.xlu0
    %v158 = vpop.trf.xlu0
    %v159 = vpop.trf.xlu0
    %v160 = vpop.trf.xlu0
    %v161 = vpop.trf.xlu0
    %v162 = vpop.trf.xlu0
    %v163 = vpop.trf.xlu0
    %v164 = vpop.trf.xlu0
    %v165 = vpop.trf.xlu0
    %v166 = vpop.trf.xlu0
    %v167 = vpop.trf.xlu0
    %168 = vset.pattern.permute.xlu0 64
    %169 = vperm.xlu0 %168, %v128
    %v170 = vpop.permute.xlu0 %169
    %v172 = vlaneseq
    %v173 = vshrl.u32 %v172, 7
    %v174 = vsub.s32 0, %v173
    %v175 = vrot.slane %v152, %v174
    %v176 = vadd.f32 %v170, %v175
    %vm177 = vcmp.gt.f32.partialorder %v176, 0.0
    %v178 = vmul.f32 %v176, 0.2
    %v179 = vsel %vm177, %v176, %v178
    %v180 = vadd.f32 %v179, %v131
    %vm181 = vcmask 64512
    %v182 = vsel %vm181, %v180, -inf
    %183 = vmax.xlane.f32.xlu0 %v182
    %v184 = vpop.xlane.xlu0 %183
    %v185 = vsub.f32 %v180, %v184
    %v186 = vmul.f32 %v185, 1.442695
    %v187 = vpow.pop %v186
    %v188 = vsel %vm181, %v187, 0.0
    %189 = vadd.xlane.f32.xlu0 %v188
    %v190 = vpop.xlane.xlu0 %189
    %v191 = vrcp.pop %v190
    %v192 = vmul.f32 %v190, %v191
    %v193 = vsub.f32 2.0, %v192
    %v194 = vmul.f32 %v191, %v193
    %v195 = vmul.f32 %v187, %v194
    %v197 = vsel %vm181, %v195, 0
    %199 = vmatprep.subr.mxu0 0.0
    %200 = vmatpush1.msra.mxu0 %v128
    %201 = vmatprep.subr.mxu0 0.0
    %202 = vmatpush1.msra.mxu0 0.0
    %203 = vmatprep.subr.mxu0 0.0
    %204 = vmatpush1.msra.mxu0 0.0
    %205 = vmatprep.subr.mxu0 0.0
    %206 = vmatpush1.msra.mxu0 0.0
    %207 = vmatprep.subr.mxu0 0.0
    %208 = vmatpush1.msra.mxu0 0.0
    %209 = vmatprep.subr.mxu0 0.0
    %210 = vmatpush1.msra.mxu0 0.0
    %211 = vmatprep.subr.mxu0 0.0
    %212 = vmatpush1.msra.mxu0 0.0
    %213 = vmatprep.subr.mxu0 0.0
    %214 = vmatpush1.msra.mxu0 0.0
    %215 = vmatprep.subr.mxu0 0.0
    %216 = vmatpush1.msra.mxu0 0.0
    %217 = vmatprep.subr.mxu0 0.0
    %218 = vmatpush1.msra.mxu0 0.0
    %219 = vmatprep.subr.mxu0 0.0
    %220 = vmatpush1.msra.mxu0 0.0
    %221 = vmatprep.subr.mxu0 0.0
    %222 = vmatpush1.msra.mxu0 0.0
    %223 = vmatprep.subr.mxu0 0.0
    %224 = vmatpush1.msra.mxu0 0.0
    %225 = vmatprep.subr.mxu0 0.0
    %226 = vmatpush1.msra.mxu0 0.0
    %227 = vmatprep.subr.mxu0 0.0
    %228 = vmatpush1.msra.mxu0 0.0
    %229 = vmatprep.subr.mxu0 0.0
    %230 = vmatpush1.msra.mxu0 0.0
    %231 = vmatprep.subr.mxu0 0.0
    %232 = vmatpush1.msra.mxu0 0.0
    %233 = vmatprep.subr.mxu0 0.0
    %234 = vmatpush1.msra.mxu0 0.0
    %235 = vmatprep.subr.mxu0 0.0
    %236 = vmatpush1.msra.mxu0 0.0
    %237 = vmatprep.subr.mxu0 0.0
    %238 = vmatpush1.msra.mxu0 0.0
    %239 = vmatprep.subr.mxu0 0.0
    %240 = vmatpush1.msra.mxu0 0.0
    %241 = vmatprep.subr.mxu0 0.0
    %242 = vmatpush1.msra.mxu0 0.0
    %243 = vmatprep.subr.mxu0 0.0
    %244 = vmatpush1.msra.mxu0 0.0
    %245 = vmatprep.subr.mxu0 0.0
    %246 = vmatpush1.msra.mxu0 0.0
    %247 = vmatprep.subr.mxu0 0.0
    %248 = vmatpush1.msra.mxu0 0.0
    %249 = vmatprep.subr.mxu0 0.0
    %250 = vmatpush1.msra.mxu0 0.0
    %251 = vmatprep.subr.mxu0 0.0
    %252 = vmatpush1.msra.mxu0 0.0
    %253 = vmatprep.subr.mxu0 0.0
    %254 = vmatpush1.msra.mxu0 0.0
    %255 = vmatprep.subr.mxu0 0.0
    %256 = vmatpush1.msra.mxu0 0.0
    %257 = vmatprep.subr.mxu0 0.0
    %258 = vmatpush1.msra.mxu0 0.0
    %259 = vmatprep.subr.mxu0 0.0
    %260 = vmatpush1.msra.mxu0 0.0
    %261 = vmatprep.subr.mxu0 0.0
    %262 = vmatpush1.msra.mxu0 0.0
    %263 = vmatprep.mubr.f32.mxu0 0.0
    %264 = vmatmul.mubr.f32.gmra.mrb[0].mxu0 %v197
    %v265 = vpop.f32.mrb[0].mxu0
    %v266 = vadd.f32 0.0, %v265
    %v267 = vpop.f32.mrb[0].mxu0
    %268 = vdwg.mxu0
    %vm269 = vcmp.gt.f32.partialorder %v266, 0.0
    %v270 = vmul.f32 %v266, 1.442695
    %v271 = vpow.pop %v270
    %v272 = vsub.f32 %v271, 1.0
    %v273 = vsel %vm269, %v266, %v272
    %274 = vrot.lane.b32.xlu0 %v128, 59
    %v275 = vpop.permute.xlu0 %274
    %277 = vxpose.xlu0.b32.start [1/16] %v275, 128
    %278 = vxpose.xlu0.b32.cont [2/16] 0.0, 128
    %279 = vxpose.xlu0.b32.cont [3/16] 0.0, 128
    %280 = vxpose.xlu0.b32.cont [4/16] 0.0, 128
    %281 = vxpose.xlu0.b32.cont [5/16] 0.0, 128
    %282 = vxpose.xlu0.b32.cont [6/16] 0.0, 128
    %283 = vxpose.xlu0.b32.cont [7/16] 0.0, 128
    %284 = vxpose.xlu0.b32.cont [8/16] 0.0, 128
    %285 = vxpose.xlu0.b32.cont [9/16] 0.0, 128
    %286 = vxpose.xlu0.b32.cont [10/16] 0.0, 128
    %287 = vxpose.xlu0.b32.cont [11/16] 0.0, 128
    %288 = vxpose.xlu0.b32.cont [12/16] 0.0, 128
    %289 = vxpose.xlu0.b32.cont [13/16] 0.0, 128
    %290 = vxpose.xlu0.b32.cont [14/16] 0.0, 128
    %291 = vxpose.xlu0.b32.cont [15/16] 0.0, 128
    %292 = vxpose.xlu0.b32.end [16/16] 0.0, 128
    %v293 = vpop.trf.xlu0
    %v294 = vpop.trf.xlu0
    %v295 = vpop.trf.xlu0
    %v296 = vpop.trf.xlu0
    %v297 = vpop.trf.xlu0
    %v298 = vpop.trf.xlu0
    %v299 = vpop.trf.xlu0
    %v300 = vpop.trf.xlu0
    %v301 = vpop.trf.xlu0
    %v302 = vpop.trf.xlu0
    %v303 = vpop.trf.xlu0
    %v304 = vpop.trf.xlu0
    %v305 = vpop.trf.xlu0
    %v306 = vpop.trf.xlu0
    %v307 = vpop.trf.xlu0
    %v308 = vpop.trf.xlu0
    %309 = vset.pattern.permute.xlu0 65
    %310 = vperm.xlu0 %309, %v128
    %v311 = vpop.permute.xlu0 %310
    %v313 = vlaneseq
    %v314 = vshrl.u32 %v313, 7
    %v315 = vsub.s32 0, %v314
    %v316 = vrot.slane %v293, %v315
    %v317 = vadd.f32 %v311, %v316
    %vm318 = vcmp.gt.f32.partialorder %v317, 0.0
    %v319 = vmul.f32 %v317, 0.2
    %v320 = vsel %vm318, %v317, %v319
    %v321 = vadd.f32 %v320, %v131
    %v322 = vsel %vm181, %v321, -inf
    %323 = vmax.xlane.f32.xlu0 %v322
    %v324 = vpop.xlane.xlu0 %323
    %v325 = vsub.f32 %v321, %v324
    %v326 = vmul.f32 %v325, 1.442695
    %v327 = vpow.pop %v326
    %v328 = vsel %vm181, %v327, 0.0
    %329 = vadd.xlane.f32.xlu0 %v328
    %v330 = vpop.xlane.xlu0 %329
    %v331 = vrcp.pop %v330
    %v332 = vmul.f32 %v330, %v331
    %v333 = vsub.f32 2.0, %v332
    %v334 = vmul.f32 %v331, %v333
    %v335 = vmul.f32 %v327, %v334
    %336 = vrot.lane.b32.xlu0 %v128, 112
    %v337 = vpop.permute.xlu0 %336
    %v340 = vsel %vm181, %v335, 0
    %342 = vmatprep.subr.mxu0 0.0
    %343 = vmatpush1.msra.mxu0 %v337
    %344 = vmatprep.subr.mxu0 0.0
    %345 = vmatpush1.msra.mxu0 0.0
    %346 = vmatprep.subr.mxu0 0.0
    %347 = vmatpush1.msra.mxu0 0.0
    %348 = vmatprep.subr.mxu0 0.0
    %349 = vmatpush1.msra.mxu0 0.0
    %350 = vmatprep.subr.mxu0 0.0
    %351 = vmatpush1.msra.mxu0 0.0
    %352 = vmatprep.subr.mxu0 0.0
    %353 = vmatpush1.msra.mxu0 0.0
    %354 = vmatprep.subr.mxu0 0.0
    %355 = vmatpush1.msra.mxu0 0.0
    %356 = vmatprep.subr.mxu0 0.0
    %357 = vmatpush1.msra.mxu0 0.0
    %358 = vmatprep.subr.mxu0 0.0
    %359 = vmatpush1.msra.mxu0 0.0
    %360 = vmatprep.subr.mxu0 0.0
    %361 = vmatpush1.msra.mxu0 0.0
    %362 = vmatprep.subr.mxu0 0.0
    %363 = vmatpush1.msra.mxu0 0.0
    %364 = vmatprep.subr.mxu0 0.0
    %365 = vmatpush1.msra.mxu0 0.0
    %366 = vmatprep.subr.mxu0 0.0
    %367 = vmatpush1.msra.mxu0 0.0
    %368 = vmatprep.subr.mxu0 0.0
    %369 = vmatpush1.msra.mxu0 0.0
    %370 = vmatprep.subr.mxu0 0.0
    %371 = vmatpush1.msra.mxu0 0.0
    %372 = vmatprep.subr.mxu0 0.0
    %373 = vmatpush1.msra.mxu0 0.0
    %374 = vmatprep.subr.mxu0 0.0
    %375 = vmatpush1.msra.mxu0 0.0
    %376 = vmatprep.subr.mxu0 0.0
    %377 = vmatpush1.msra.mxu0 0.0
    %378 = vmatprep.subr.mxu0 0.0
    %379 = vmatpush1.msra.mxu0 0.0
    %380 = vmatprep.subr.mxu0 0.0
    %381 = vmatpush1.msra.mxu0 0.0
    %382 = vmatprep.subr.mxu0 0.0
    %383 = vmatpush1.msra.mxu0 0.0
    %384 = vmatprep.subr.mxu0 0.0
    %385 = vmatpush1.msra.mxu0 0.0
    %386 = vmatprep.subr.mxu0 0.0
    %387 = vmatpush1.msra.mxu0 0.0
    %388 = vmatprep.subr.mxu0 0.0
    %389 = vmatpush1.msra.mxu0 0.0
    %390 = vmatprep.subr.mxu0 0.0
    %391 = vmatpush1.msra.mxu0 0.0
    %392 = vmatprep.subr.mxu0 0.0
    %393 = vmatpush1.msra.mxu0 0.0
    %394 = vmatprep.subr.mxu0 0.0
    %395 = vmatpush1.msra.mxu0 0.0
    %396 = vmatprep.subr.mxu0 0.0
    %397 = vmatpush1.msra.mxu0 0.0
    %398 = vmatprep.subr.mxu0 0.0
    %399 = vmatpush1.msra.mxu0 0.0
    %400 = vmatprep.subr.mxu0 0.0
    %401 = vmatpush1.msra.mxu0 0.0
    %402 = vmatprep.subr.mxu0 0.0
    %403 = vmatpush1.msra.mxu0 0.0
    %404 = vmatprep.subr.mxu0 0.0
    %405 = vmatpush1.msra.mxu0 0.0
    %406 = vmatprep.mubr.f32.mxu0 0.0
    %407 = vmatmul.mubr.f32.gmra.mrb[0].mxu0 %v340
    %v408 = vpop.f32.mrb[0].mxu0
    %v409 = vadd.f32 0.0, %v408
    %v410 = vpop.f32.mrb[0].mxu0
    %411 = vdwg.mxu0
    %vm412 = vcmp.gt.f32.partialorder %v409, 0.0
    %v413 = vmul.f32 %v409, 1.442695
    %v414 = vpow.pop %v413
    %v415 = vsub.f32 %v414, 1.0
    %v416 = vsel %vm412, %v409, %v415
    %417 = vrot.lane.b32.xlu0 %v128, 58
    %v418 = vpop.permute.xlu0 %417
    %420 = vxpose.xlu0.b32.start [1/16] %v418, 128
    %421 = vxpose.xlu0.b32.cont [2/16] 0.0, 128
    %422 = vxpose.xlu0.b32.cont [3/16] 0.0, 128
    %423 = vxpose.xlu0.b32.cont [4/16] 0.0, 128
    %424 = vxpose.xlu0.b32.cont [5/16] 0.0, 128
    %425 = vxpose.xlu0.b32.cont [6/16] 0.0, 128
    %426 = vxpose.xlu0.b32.cont [7/16] 0.0, 128
    %427 = vxpose.xlu0.b32.cont [8/16] 0.0, 128
    %428 = vxpose.xlu0.b32.cont [9/16] 0.0, 128
    %429 = vxpose.xlu0.b32.cont [10/16] 0.0, 128
    %430 = vxpose.xlu0.b32.cont [11/16] 0.0, 128
    %431 = vxpose.xlu0.b32.cont [12/16] 0.0, 128
    %432 = vxpose.xlu0.b32.cont [13/16] 0.0, 128
    %433 = vxpose.xlu0.b32.cont [14/16] 0.0, 128
    %434 = vxpose.xlu0.b32.cont [15/16] 0.0, 128
    %435 = vxpose.xlu0.b32.end [16/16] 0.0, 128
    %v436 = vpop.trf.xlu0
    %v437 = vpop.trf.xlu0
    %v438 = vpop.trf.xlu0
    %v439 = vpop.trf.xlu0
    %v440 = vpop.trf.xlu0
    %v441 = vpop.trf.xlu0
    %v442 = vpop.trf.xlu0
    %v443 = vpop.trf.xlu0
    %v444 = vpop.trf.xlu0
    %v445 = vpop.trf.xlu0
    %v446 = vpop.trf.xlu0
    %v447 = vpop.trf.xlu0
    %v448 = vpop.trf.xlu0
    %v449 = vpop.trf.xlu0
    %v450 = vpop.trf.xlu0
    %v451 = vpop.trf.xlu0
    %452 = vset.pattern.permute.xlu0 66
    %453 = vperm.xlu0 %452, %v128
    %v454 = vpop.permute.xlu0 %453
    %v456 = vlaneseq
    %v457 = vshrl.u32 %v456, 7
    %v458 = vsub.s32 0, %v457
    %v459 = vrot.slane %v436, %v458
    %v460 = vadd.f32 %v454, %v459
    %vm461 = vcmp.gt.f32.partialorder %v460, 0.0
    %v462 = vmul.f32 %v460, 0.2
    %v463 = vsel %vm461, %v460, %v462
    %v464 = vadd.f32 %v463, %v131
    %v465 = vsel %vm181, %v464, -inf
    %466 = vmax.xlane.f32.xlu0 %v465
    %v467 = vpop.xlane.xlu0 %466
    %v468 = vsub.f32 %v464, %v467
    %v469 = vmul.f32 %v468, 1.442695
    %v470 = vpow.pop %v469
    %v471 = vsel %vm181, %v470, 0.0
    %472 = vadd.xlane.f32.xlu0 %v471
    %v473 = vpop.xlane.xlu0 %472
    %v474 = vrcp.pop %v473
    %v475 = vmul.f32 %v473, %v474
    %v476 = vsub.f32 2.0, %v475
    %v477 = vmul.f32 %v474, %v476
    %v478 = vmul.f32 %v470, %v477
    %479 = vrot.lane.b32.xlu0 %v128, 96
    %v480 = vpop.permute.xlu0 %479
    %v483 = vsel %vm181, %v478, 0
    %485 = vmatprep.subr.mxu0 0.0
    %486 = vmatpush1.msra.mxu0 %v480
    %487 = vmatprep.subr.mxu0 0.0
    %488 = vmatpush1.msra.mxu0 0.0
    %489 = vmatprep.subr.mxu0 0.0
    %490 = vmatpush1.msra.mxu0 0.0
    %491 = vmatprep.subr.mxu0 0.0
    %492 = vmatpush1.msra.mxu0 0.0
    %493 = vmatprep.subr.mxu0 0.0
    %494 = vmatpush1.msra.mxu0 0.0
    %495 = vmatprep.subr.mxu0 0.0
    %496 = vmatpush1.msra.mxu0 0.0
    %497 = vmatprep.subr.mxu0 0.0
    %498 = vmatpush1.msra.mxu0 0.0
    %499 = vmatprep.subr.mxu0 0.0
    %500 = vmatpush1.msra.mxu0 0.0
    %501 = vmatprep.subr.mxu0 0.0
    %502 = vmatpush1.msra.mxu0 0.0
    %503 = vmatprep.subr.mxu0 0.0
    %504 = vmatpush1.msra.mxu0 0.0
    %505 = vmatprep.subr.mxu0 0.0
    %506 = vmatpush1.msra.mxu0 0.0
    %507 = vmatprep.subr.mxu0 0.0
    %508 = vmatpush1.msra.mxu0 0.0
    %509 = vmatprep.subr.mxu0 0.0
    %510 = vmatpush1.msra.mxu0 0.0
    %511 = vmatprep.subr.mxu0 0.0
    %512 = vmatpush1.msra.mxu0 0.0
    %513 = vmatprep.subr.mxu0 0.0
    %514 = vmatpush1.msra.mxu0 0.0
    %515 = vmatprep.subr.mxu0 0.0
    %516 = vmatpush1.msra.mxu0 0.0
    %517 = vmatprep.subr.mxu0 0.0
    %518 = vmatpush1.msra.mxu0 0.0
    %519 = vmatprep.subr.mxu0 0.0
    %520 = vmatpush1.msra.mxu0 0.0
    %521 = vmatprep.subr.mxu0 0.0
    %522 = vmatpush1.msra.mxu0 0.0
    %523 = vmatprep.subr.mxu0 0.0
    %524 = vmatpush1.msra.mxu0 0.0
    %525 = vmatprep.subr.mxu0 0.0
    %526 = vmatpush1.msra.mxu0 0.0
    %527 = vmatprep.subr.mxu0 0.0
    %528 = vmatpush1.msra.mxu0 0.0
    %529 = vmatprep.subr.mxu0 0.0
    %530 = vmatpush1.msra.mxu0 0.0
    %531 = vmatprep.subr.mxu0 0.0
    %532 = vmatpush1.msra.mxu0 0.0
    %533 = vmatprep.subr.mxu0 0.0
    %534 = vmatpush1.msra.mxu0 0.0
    %535 = vmatprep.subr.mxu0 0.0
    %536 = vmatpush1.msra.mxu0 0.0
    %537 = vmatprep.subr.mxu0 0.0
    %538 = vmatpush1.msra.mxu0 0.0
    %539 = vmatprep.subr.mxu0 0.0
    %540 = vmatpush1.msra.mxu0 0.0
    %541 = vmatprep.subr.mxu0 0.0
    %542 = vmatpush1.msra.mxu0 0.0
    %543 = vmatprep.subr.mxu0 0.0
    %544 = vmatpush1.msra.mxu0 0.0
    %545 = vmatprep.subr.mxu0 0.0
    %546 = vmatpush1.msra.mxu0 0.0
    %547 = vmatprep.subr.mxu0 0.0
    %548 = vmatpush1.msra.mxu0 0.0
    %549 = vmatprep.mubr.f32.mxu0 0.0
    %550 = vmatmul.mubr.f32.gmra.mrb[0].mxu0 %v483
    %v551 = vpop.f32.mrb[0].mxu0
    %v552 = vadd.f32 0.0, %v551
    %v553 = vpop.f32.mrb[0].mxu0
    %554 = vdwg.mxu0
    %vm555 = vcmp.gt.f32.partialorder %v552, 0.0
    %v556 = vmul.f32 %v552, 1.442695
    %v557 = vpow.pop %v556
    %v558 = vsub.f32 %v557, 1.0
    %v559 = vsel %vm555, %v552, %v558
    %560 = vrot.lane.b32.xlu0 %v128, 57
    %v561 = vpop.permute.xlu0 %560
    %563 = vxpose.xlu0.b32.start [1/16] %v561, 128
    %564 = vxpose.xlu0.b32.cont [2/16] 0.0, 128
    %565 = vxpose.xlu0.b32.cont [3/16] 0.0, 128
    %566 = vxpose.xlu0.b32.cont [4/16] 0.0, 128
    %567 = vxpose.xlu0.b32.cont [5/16] 0.0, 128
    %568 = vxpose.xlu0.b32.cont [6/16] 0.0, 128
    %569 = vxpose.xlu0.b32.cont [7/16] 0.0, 128
    %570 = vxpose.xlu0.b32.cont [8/16] 0.0, 128
    %571 = vxpose.xlu0.b32.cont [9/16] 0.0, 128
    %572 = vxpose.xlu0.b32.cont [10/16] 0.0, 128
    %573 = vxpose.xlu0.b32.cont [11/16] 0.0, 128
    %574 = vxpose.xlu0.b32.cont [12/16] 0.0, 128
    %575 = vxpose.xlu0.b32.cont [13/16] 0.0, 128
    %576 = vxpose.xlu0.b32.cont [14/16] 0.0, 128
    %577 = vxpose.xlu0.b32.cont [15/16] 0.0, 128
    %578 = vxpose.xlu0.b32.end [16/16] 0.0, 128
    %v579 = vpop.trf.xlu0
    %v580 = vpop.trf.xlu0
    %v581 = vpop.trf.xlu0
    %v582 = vpop.trf.xlu0
    %v583 = vpop.trf.xlu0
    %v584 = vpop.trf.xlu0
    %v585 = vpop.trf.xlu0
    %v586 = vpop.trf.xlu0
    %v587 = vpop.trf.xlu0
    %v588 = vpop.trf.xlu0
    %v589 = vpop.trf.xlu0
    %v590 = vpop.trf.xlu0
    %v591 = vpop.trf.xlu0
    %v592 = vpop.trf.xlu0
    %v593 = vpop.trf.xlu0
    %v594 = vpop.trf.xlu0
    %595 = vset.pattern.permute.xlu0 67
    %596 = vperm.xlu0 %595, %v128
    %v597 = vpop.permute.xlu0 %596
    %v599 = vlaneseq
    %v600 = vshrl.u32 %v599, 7
    %v601 = vsub.s32 0, %v600
    %v602 = vrot.slane %v579, %v601
    %v603 = vadd.f32 %v597, %v602
    %vm604 = vcmp.gt.f32.partialorder %v603, 0.0
    %v605 = vmul.f32 %v603, 0.2
    %v606 = vsel %vm604, %v603, %v605
    %v607 = vadd.f32 %v606, %v131
    %v608 = vsel %vm181, %v607, -inf
    %609 = vmax.xlane.f32.xlu0 %v608
    %v610 = vpop.xlane.xlu0 %609
    %v611 = vsub.f32 %v607, %v610
    %v612 = vmul.f32 %v611, 1.442695
    %v613 = vpow.pop %v612
    %v614 = vsel %vm181, %v613, 0.0
    %615 = vadd.xlane.f32.xlu0 %v614
    %v616 = vpop.xlane.xlu0 %615
    %v617 = vrcp.pop %v616
    %v618 = vmul.f32 %v616, %v617
    %v619 = vsub.f32 2.0, %v618
    %v620 = vmul.f32 %v617, %v619
    %v621 = vmul.f32 %v613, %v620
    %622 = vrot.lane.b32.xlu0 %v128, 80
    %v623 = vpop.permute.xlu0 %622
    %v626 = vsel %vm181, %v621, 0
    %628 = vmatprep.subr.mxu0 0.0
    %629 = vmatpush1.msra.mxu0 %v623
    %630 = vmatprep.subr.mxu0 0.0
    %631 = vmatpush1.msra.mxu0 0.0
    %632 = vmatprep.subr.mxu0 0.0
    %633 = vmatpush1.msra.mxu0 0.0
    %634 = vmatprep.subr.mxu0 0.0
    %635 = vmatpush1.msra.mxu0 0.0
    %636 = vmatprep.subr.mxu0 0.0
    %637 = vmatpush1.msra.mxu0 0.0
    %638 = vmatprep.subr.mxu0 0.0
    %639 = vmatpush1.msra.mxu0 0.0
    %640 = vmatprep.subr.mxu0 0.0
    %641 = vmatpush1.msra.mxu0 0.0
    %642 = vmatprep.subr.mxu0 0.0
    %643 = vmatpush1.msra.mxu0 0.0
    %644 = vmatprep.subr.mxu0 0.0
    %645 = vmatpush1.msra.mxu0 0.0
    %646 = vmatprep.subr.mxu0 0.0
    %647 = vmatpush1.msra.mxu0 0.0
    %648 = vmatprep.subr.mxu0 0.0
    %649 = vmatpush1.msra.mxu0 0.0
    %650 = vmatprep.subr.mxu0 0.0
    %651 = vmatpush1.msra.mxu0 0.0
    %652 = vmatprep.subr.mxu0 0.0
    %653 = vmatpush1.msra.mxu0 0.0
    %654 = vmatprep.subr.mxu0 0.0
    %655 = vmatpush1.msra.mxu0 0.0
    %656 = vmatprep.subr.mxu0 0.0
    %657 = vmatpush1.msra.mxu0 0.0
    %658 = vmatprep.subr.mxu0 0.0
    %659 = vmatpush1.msra.mxu0 0.0
    %660 = vmatprep.subr.mxu0 0.0
    %661 = vmatpush1.msra.mxu0 0.0
    %662 = vmatprep.subr.mxu0 0.0
    %663 = vmatpush1.msra.mxu0 0.0
    %664 = vmatprep.subr.mxu0 0.0
    %665 = vmatpush1.msra.mxu0 0.0
    %666 = vmatprep.subr.mxu0 0.0
    %667 = vmatpush1.msra.mxu0 0.0
    %668 = vmatprep.subr.mxu0 0.0
    %669 = vmatpush1.msra.mxu0 0.0
    %670 = vmatprep.subr.mxu0 0.0
    %671 = vmatpush1.msra.mxu0 0.0
    %672 = vmatprep.subr.mxu0 0.0
    %673 = vmatpush1.msra.mxu0 0.0
    %674 = vmatprep.subr.mxu0 0.0
    %675 = vmatpush1.msra.mxu0 0.0
    %676 = vmatprep.subr.mxu0 0.0
    %677 = vmatpush1.msra.mxu0 0.0
    %678 = vmatprep.subr.mxu0 0.0
    %679 = vmatpush1.msra.mxu0 0.0
    %680 = vmatprep.subr.mxu0 0.0
    %681 = vmatpush1.msra.mxu0 0.0
    %682 = vmatprep.subr.mxu0 0.0
    %683 = vmatpush1.msra.mxu0 0.0
    %684 = vmatprep.subr.mxu0 0.0
    %685 = vmatpush1.msra.mxu0 0.0
    %686 = vmatprep.subr.mxu0 0.0
    %687 = vmatpush1.msra.mxu0 0.0
    %688 = vmatprep.subr.mxu0 0.0
    %689 = vmatpush1.msra.mxu0 0.0
    %690 = vmatprep.subr.mxu0 0.0
    %691 = vmatpush1.msra.mxu0 0.0
    %692 = vmatprep.mubr.f32.mxu0 0.0
    %693 = vmatmul.mubr.f32.gmra.mrb[0].mxu0 %v626
    %v694 = vpop.f32.mrb[0].mxu0
    %v695 = vadd.f32 0.0, %v694
    %v696 = vpop.f32.mrb[0].mxu0
    %697 = vdwg.mxu0
    %vm698 = vcmp.gt.f32.partialorder %v695, 0.0
    %v699 = vmul.f32 %v695, 1.442695
    %v700 = vpow.pop %v699
    %v701 = vsub.f32 %v700, 1.0
    %v702 = vsel %vm698, %v695, %v701
    %704 = vrot.lane.b32.xlu0 %v416, 16
    %v705 = vpop.permute.xlu0 %704
    %708 = vrot.lane.b32.xlu0 %v559, 32
    %v709 = vpop.permute.xlu0 %708
    %712 = vrot.lane.b32.xlu0 %v702, 48
    %v713 = vpop.permute.xlu0 %712
    %vm715 = vcmask 130048
    %v716 = vsel %vm715, %v273, %v705
    %v717 = vsel %vm57, %v716, %v709
    %vm718 = vcmask 392192
    %v719 = vsel %vm718, %v717, %v713
    %vm720 = vcmask 523264
    %721 = vst.msk [vmem:[#allocation8] sm:$0xff] %vm720, %v719
    // Predicated region
    $region26: #{tpu_custom_call.1} parent=1 // pred_check
      _
    $region27: #{tpu_custom_call.1} parent=1 // pred_check_branch
      %723 = sbr.rel (0) target = $region29
    $region28: #{tpu_custom_call.1} parent=1 // pred_region
      %s725 = ssub.s32 128, 128
      %726 = vsyncadd [#allocation4], %s725
      %s728 = sshll.u32 [#allocation8], 4
      %s729 = int_to_ptr.vmem [resolvable:$true] %s728
      %731 = dma.vmem_to_hbm [thread:$0]  %s729, 128, %s3, [#allocation4]
    $region29: #{tpu_custom_call.1} parent=1 // pred_fallthru
      _
    // Predicated region
    $region30: #{tpu_custom_call.1} parent=1 // pred_check
      _
    $region31: #{tpu_custom_call.1} parent=1 // pred_check_branch
      %733 = sbr.rel (0) target = $region33
    $region32: #{tpu_custom_call.1} parent=1 // pred_region
      %734 = dma.done [#allocation4], 128
    $region33: #{tpu_custom_call.1} parent=1 // pred_fallthru
      _
    %735 = vsyncpa [#allocation3], 1
    %736 = vsyncpa [#allocation6], 1
    %737 = vsyncpa [#allocation4], 1

</llo_original>
